<compile_context>
chip_gen: v6e
topology: v6e:2x2x1
jax: 0.10.0
libtpu: 0.0.40
codegen_flags: <defaults>
</compile_context>

<pallas_src>
import jax
import jax.numpy as jnp
from jax.experimental import pallas as pl
from jax.experimental.pallas import tpu as pltpu

INPUT_SIZE = 25
HIDDEN_SIZE = 5

K = INPUT_SIZE + HIDDEN_SIZE   # 30 useful contraction rows ([x | h])
BIAS_ROW = K                   # row 30 of the slab carries the fused bias
K_PAD = 32                     # 30 + bias row, padded to a sublane multiple
H_PAD = 8                      # hidden 5 -> 8 sublanes
LANE = 128
MAX_BLOCK_B = 2048             # lanes of batch per grid step


def _round_up(n, m):
    return (n + m - 1) // m * m


def rnn_cell_kernel(w_ref, xh_ref, o_ref):
    # Single MXU matmul: (8, 32) @ (32, block_b).  The bias is folded into
    # contraction row BIAS_ROW (all-ones row in the slab), so there is no
    # separate bias operand and no VPU broadcast-add.
    pre = jnp.dot(w_ref[...], xh_ref[...], preferred_element_type=jnp.float32)
    # tanh (EUP) + relu (VPU) over a small (8, block_b) tile; stores are
    # lane-dense (batch on the lane axis).
    o_ref[...] = jnp.maximum(jnp.tanh(pre), 0.0).astype(o_ref.dtype)


def prepare_params(w_ih, w_hh, b_ih, b_hh):
    """One-time parameter prep (do NOT repeat per call).

    Fuses W_ih, W_hh and both biases into a single (H_PAD, K_PAD) matrix for
    the transposed formulation  out^T = W_fused @ [x | h | 1]^T.
    Padding rows/cols are zero and numerically inert.
    """
    w = jnp.zeros((H_PAD, K_PAD), jnp.float32)
    w = w.at[:HIDDEN_SIZE, :INPUT_SIZE].set(w_ih.astype(jnp.float32))
    w = w.at[:HIDDEN_SIZE, INPUT_SIZE:K].set(w_hh.astype(jnp.float32))
    w = w.at[:HIDDEN_SIZE, BIAS_ROW].set((b_ih + b_hh).astype(jnp.float32))
    return w


def simple_rnn_forward(x, states, w_t_pad):
    batch = x.shape[0]
    block_b = min(_round_up(batch, LANE), MAX_BLOCK_B)
    b_pad = _round_up(batch, block_b)

    # [x | h | 1]^T slab: batch on lanes, only 32 contraction rows.
    # (In a real pipeline the producer would emit this batch-minor layout
    #  directly; here the wrapper builds it once.)
    xh_t = jnp.zeros((K_PAD, b_pad), jnp.float32)
    xh_t = xh_t.at[:INPUT_SIZE, :batch].set(x.astype(jnp.float32).T)
    xh_t = xh_t.at[INPUT_SIZE:K, :batch].set(states.astype(jnp.float32).T)
    xh_t = xh_t.at[BIAS_ROW, :].set(1.0)   # bias lane (padded cols sliced off)

    grid = (b_pad // block_b,)
    out_t = pl.pallas_call(
        rnn_cell_kernel,
        out_shape=jax.ShapeDtypeStruct((H_PAD, b_pad), jnp.float32),
        grid=grid,
        in_specs=[
            pl.BlockSpec((H_PAD, K_PAD), lambda i: (0, 0)),    # fused weights
            pl.BlockSpec((K_PAD, block_b), lambda i: (0, i)),  # [x|h|1]^T tile
        ],
        out_specs=pl.BlockSpec((H_PAD, block_b), lambda i: (0, i)),
        compiler_params=pltpu.CompilerParams(
            dimension_semantics=("parallel",)),
    )(w_t_pad, xh_t)

    # Slice off padding and return in the PyTorch (batch, hidden) layout.
    return out_t[:HIDDEN_SIZE, :batch].T


def init_params(key):
    # Deterministic init matching PyTorch RNNCell's U(-1/sqrt(H), 1/sqrt(H)).
    bound = 1.0 / jnp.sqrt(jnp.float32(HIDDEN_SIZE))
    k1, k2, k3, k4 = jax.random.split(key, 4)
    w_ih = jax.random.uniform(k1, (HIDDEN_SIZE, INPUT_SIZE), jnp.float32, -bound, bound)
    w_hh = jax.random.uniform(k2, (HIDDEN_SIZE, HIDDEN_SIZE), jnp.float32, -bound, bound)
    b_ih = jax.random.uniform(k3, (HIDDEN_SIZE,), jnp.float32, -bound, bound)
    b_hh = jax.random.uniform(k4, (HIDDEN_SIZE,), jnp.float32, -bound, bound)
    return w_ih, w_hh, b_ih, b_hh


if __name__ == "__main__":
    key = jax.random.PRNGKey(0)
    k_params, k_x, k_h = jax.random.split(key, 3)

    batch = 2
    x = jax.random.normal(k_x, (batch, INPUT_SIZE), jnp.float32)
    states = jax.random.normal(k_h, (batch, HIDDEN_SIZE), jnp.float32)
    w_ih, w_hh, b_ih, b_hh = init_params(k_params)

    # One-time parameter prep (fuse + fold bias + pad).
    w_t_pad = prepare_params(w_ih, w_hh, b_ih, b_hh)

    out = simple_rnn_forward(x, states, w_t_pad)
    out = jax.block_until_ready(out)

    # Pure-JAX reference check (original PyTorch-layout math).
    ref = jnp.maximum(
        jnp.tanh(x @ w_ih.T + states @ w_hh.T + b_ih + b_hh), 0.0
    )
    assert out.shape == (batch, HIDDEN_SIZE)
    assert jnp.allclose(out, ref, atol=1e-5, rtol=1e-5)

    print("KERNEL_OK")
</pallas_src>

<mosaic_0001>
module attributes {stable_mosaic.version = 11 : i64} {
  func.func @rnn_cell_kernel(%arg0: i32, %arg1: memref<8x32xf32, #tpu.memory_space<vmem>>, %arg2: memref<32x128xf32, #tpu.memory_space<vmem>>, %arg3: memref<8x128xf32, #tpu.memory_space<vmem>>) attributes {dimension_semantics = [#tpu.dimension_semantics<parallel>], iteration_bounds = array<i64: 1>, scalar_prefetch = 0 : i64, scratch_operands = 0 : i64, tpu.core_type = #tpu.core_type<tc>, window_params = [{pipeline_mode = #tpu.pipeline_mode<synchronous>, transform_indices = @transform_0, window_bounds = array<i64: 8, 32>}, {transform_indices = @transform_1, window_bounds = array<i64: 32, 128>}, {transform_indices = @transform_2, window_bounds = array<i64: 8, 128>}]} {
    %c0 = arith.constant 0 : index
    %c0_0 = arith.constant 0 : index
    %0 = vector.load %arg1[%c0, %c0_0] : memref<8x32xf32, #tpu.memory_space<vmem>>, vector<8x32xf32>
    %c0_1 = arith.constant 0 : index
    %c0_2 = arith.constant 0 : index
    %1 = vector.load %arg2[%c0_1, %c0_2] : memref<32x128xf32, #tpu.memory_space<vmem>>, vector<32x128xf32>
    %cst = arith.constant dense<0.000000e+00> : vector<8x128xf32>
    %2 = tpu.matmul %0, %1, %cst {dimension_numbers = #tpu.dot_dimension_numbers<[1], [0], [0], [1], [0, 0, 1, 1], [], []>} : vector<8x32xf32>, vector<32x128xf32>, vector<8x128xf32> -> vector<8x128xf32>
    %3 = math.tanh %2 : vector<8x128xf32>
    %cst_3 = arith.constant 0.000000e+00 : f32
    %4 = vector.broadcast %cst_3 : f32 to vector<8x128xf32>
    %5 = arith.maximumf %3, %4 : vector<8x128xf32>
    %c0_4 = arith.constant 0 : index
    %c0_5 = arith.constant 0 : index
    %6 = vector.load %arg3[%c0_4, %c0_5] : memref<8x128xf32, #tpu.memory_space<vmem>>, vector<8x128xf32>
    tpu.vector_store %arg3[%c0_4, %c0_5], %5 {strides = array<i32>} : memref<8x128xf32, #tpu.memory_space<vmem>>, vector<8x128xf32>,
    return
  }
  func.func @transform_0(%arg0: i32) -> (i32, i32) {
    %c0_i32 = arith.constant 0 : i32
    %c0_i32_0 = arith.constant 0 : i32
    %c0_i32_1 = arith.constant 0 : i32
    return %c0_i32, %c0_i32_0 : i32, i32
  }
  func.func @transform_1(%arg0: i32) -> (i32, i32) {
    %c0_i32 = arith.constant 0 : i32
    %c0_i32_0 = arith.constant 0 : i32
    return %c0_i32, %arg0 : i32, i32
  }
  func.func @transform_2(%arg0: i32) -> (i32, i32) {
    %c0_i32 = arith.constant 0 : i32
    %c0_i32_0 = arith.constant 0 : i32
    return %c0_i32, %arg0 : i32, i32
  }
}

</mosaic_0001>

<llo_original>
// kernel: tpu_custom_call.1
$region0: #{tpu_custom_call.1}
  #allocation0 [shape = 'u32[]', space=smem, size = 0x4, offset = 0x4, fixed_abs, tag = 'smem constant byte address 0x4 - core index']
  #allocation1 [shape = 'u32[144,128]{1,0:T(1,128)}', space=vmem, size = 0x12000, scoped, tag = 'internal scratch']
  %s0 = inlined_call_operand.hbm [shape: f32[8,32], index: 0, kind: input, shape index: {}]
  %s1 = inlined_call_operand.hbm [shape: f32[32,128], index: 1, kind: input, shape index: {}]
  %s2 = inlined_call_operand.hbm [shape: f32[8,128], index: 2, kind: output, shape index: {}]
  %s3 = sld [smem:[#allocation0]]
  $region26: #{tpu_custom_call.1} parent=0
    _
  %s5 = ssub.s32 1, %s3
  %s6 = scalar_select 0, %s5, %s3
  $region1: #{tpu_custom_call.1} parent=0
    #allocation2 [shape = 'u8[4096]{0}', space=vmem, size = 0x1000, scoped, tag = 'input window, operand 0, single buffered']
    #allocation3 [shape = 's32[1]{0}', space=sflag, size = 0x4, scoped, tag = 'scoped memory for tpu_custom_call.1']
    #allocation4 [shape = 's32[1]{0}', space=sflag, size = 0x4, scoped, tag = 'scoped memory for tpu_custom_call.1']
    #allocation5 [shape = 'u8[16384]{0}', space=vmem, size = 0x4000, scoped, tag = 'input window, operand 1, single buffered']
    #allocation6 [shape = 's32[1]{0}', space=sflag, size = 0x4, scoped, tag = 'scoped memory for tpu_custom_call.1']
    #allocation7 [shape = 'u8[4096]{0}', space=vmem, size = 0x1000, scoped, tag = 'output window, operand 0, single buffered']
    %7 = vsyncpa [#allocation3], 0
    %8 = vsyncpa [#allocation6], 0
    %9 = vsyncpa [#allocation4], 0
    // Predicated region
    $region2: #{tpu_custom_call.1} parent=1 // pred_check
      _
    $region3: #{tpu_custom_call.1} parent=1 // pred_check_branch
      %11 = sbr.rel (0) target = $region5
    $region4: #{tpu_custom_call.1} parent=1 // pred_region
      %s13 = ssub.s32 128, 128
      %14 = vsyncadd [#allocation3], %s13
      %s16 = sshll.u32 [#allocation2], 4
      %s17 = int_to_ptr.vmem [resolvable:$true] %s16
      %19 = dma.hbm_to_vmem [thread:$0]  %s0, 128, %s17, [#allocation3]
    $region5: #{tpu_custom_call.1} parent=1 // pred_fallthru
      _
    // Predicated region
    $region6: #{tpu_custom_call.1} parent=1 // pred_check
      _
    $region7: #{tpu_custom_call.1} parent=1 // pred_check_branch
      %21 = sbr.rel (0) target = $region9
    $region8: #{tpu_custom_call.1} parent=1 // pred_region
      %s23 = ssub.s32 512, 512
      %24 = vsyncadd [#allocation6], %s23
      %s25 = sshll.u32 [#allocation5], 4
      %s26 = int_to_ptr.vmem [resolvable:$true] %s25
      %31 = dma.hbm_to_vmem [thread:$0]  %s1, 512, %s26, [#allocation6], 128, 128, 8
    $region9: #{tpu_custom_call.1} parent=1 // pred_fallthru
      _
    // Predicated region
    $region10: #{tpu_custom_call.1} parent=1 // pred_check
      _
    $region11: #{tpu_custom_call.1} parent=1 // pred_check_branch
      %33 = sbr.rel (0) target = $region13
    $region12: #{tpu_custom_call.1} parent=1 // pred_region
      %34 = dma.done [#allocation3], 128
    $region13: #{tpu_custom_call.1} parent=1 // pred_fallthru
      _
    // Predicated region
    $region14: #{tpu_custom_call.1} parent=1 // pred_check
      _
    $region15: #{tpu_custom_call.1} parent=1 // pred_check_branch
      %36 = sbr.rel (0) target = $region17
    $region16: #{tpu_custom_call.1} parent=1 // pred_region
      %37 = dma.done [#allocation6], 512
    $region17: #{tpu_custom_call.1} parent=1 // pred_fallthru
      _
    %v38 = vld [vmem:[#allocation2] sm:$0xff]
    %v39 = vld [vmem:[#allocation5] sm:$0xff]
    %v40 = vld [vmem:[#allocation5 + $0x8] sm:$0xff]
    %v41 = vld [vmem:[#allocation5 + $0x10] sm:$0xff]
    %v42 = vld [vmem:[#allocation5 + $0x18] sm:$0xff]
    %vm43 = vcmask 261120
    %v45 = vsel %vm43, %v38, 0
    %47 = vmatprep.subr.mxu0 0.0
    %48 = vmatpush1.msra.mxu0 0.0
    %49 = vmatprep.subr.mxu0 0.0
    %50 = vmatpush1.msra.mxu0 0.0
    %51 = vmatprep.subr.mxu0 0.0
    %52 = vmatpush1.msra.mxu0 0.0
    %53 = vmatprep.subr.mxu0 0.0
    %54 = vmatpush1.msra.mxu0 0.0
    %55 = vmatprep.subr.mxu0 0.0
    %56 = vmatpush1.msra.mxu0 0.0
    %57 = vmatprep.subr.mxu0 0.0
    %58 = vmatpush1.msra.mxu0 0.0
    %59 = vmatprep.subr.mxu0 0.0
    %60 = vmatpush1.msra.mxu0 0.0
    %61 = vmatprep.subr.mxu0 0.0
    %62 = vmatpush1.msra.mxu0 0.0
    %63 = vmatprep.subr.mxu0 0.0
    %64 = vmatpush1.msra.mxu0 0.0
    %65 = vmatprep.subr.mxu0 0.0
    %66 = vmatpush1.msra.mxu0 0.0
    %67 = vmatprep.subr.mxu0 0.0
    %68 = vmatpush1.msra.mxu0 0.0
    %69 = vmatprep.subr.mxu0 0.0
    %70 = vmatpush1.msra.mxu0 0.0
    %71 = vmatprep.subr.mxu0 0.0
    %72 = vmatpush1.msra.mxu0 %v42
    %73 = vmatprep.subr.mxu0 0.0
    %74 = vmatpush1.msra.mxu0 %v41
    %75 = vmatprep.subr.mxu0 0.0
    %76 = vmatpush1.msra.mxu0 %v40
    %77 = vmatprep.subr.mxu0 0.0
    %78 = vmatpush1.msra.mxu0 %v39
    %79 = vmatprep.subr.mxu0 0.0
    %80 = vmatpush2.msra.mxu0 0.0
    %81 = vmatprep.subr.mxu0 0.0
    %82 = vmatpush2.msra.mxu0 0.0
    %83 = vmatprep.subr.mxu0 0.0
    %84 = vmatpush2.msra.mxu0 0.0
    %85 = vmatprep.subr.mxu0 0.0
    %86 = vmatpush2.msra.mxu0 0.0
    %87 = vmatprep.subr.mxu0 0.0
    %88 = vmatpush2.msra.mxu0 0.0
    %89 = vmatprep.subr.mxu0 0.0
    %90 = vmatpush2.msra.mxu0 0.0
    %91 = vmatprep.subr.mxu0 0.0
    %92 = vmatpush2.msra.mxu0 0.0
    %93 = vmatprep.subr.mxu0 0.0
    %94 = vmatpush2.msra.mxu0 0.0
    %95 = vmatprep.subr.mxu0 0.0
    %96 = vmatpush2.msra.mxu0 0.0
    %97 = vmatprep.subr.mxu0 0.0
    %98 = vmatpush2.msra.mxu0 0.0
    %99 = vmatprep.subr.mxu0 0.0
    %100 = vmatpush2.msra.mxu0 0.0
    %101 = vmatprep.subr.mxu0 0.0
    %102 = vmatpush2.msra.mxu0 0.0
    %103 = vmatprep.subr.mxu0 0.0
    %104 = vmatpush2.msra.mxu0 0.0
    %105 = vmatprep.subr.mxu0 0.0
    %106 = vmatpush2.msra.mxu0 0.0
    %107 = vmatprep.subr.mxu0 0.0
    %108 = vmatpush2.msra.mxu0 0.0
    %109 = vmatprep.subr.mxu0 0.0
    %110 = vmatpush2.msra.mxu0 0.0
    %111 = vmatprep.mubr.f32.mxu0 0.0
    %112 = vmatmul.mubr.f32.gmra.mxu0 %v45
    %v113 = vpop.f32.mrf.mxu0
    %v114 = vadd.f32 0.0, %v113
    %v115 = vpop.f32.mrf.mxu0
    %116 = vdwg.mxu0
    %v117 = vtanh.pop %v114
    %v118 = vmax.f32 %v117, 0.0
    %119 = vst [vmem:[#allocation7] sm:$0xff] %v118
    // Predicated region
    $region18: #{tpu_custom_call.1} parent=1 // pred_check
      _
    $region19: #{tpu_custom_call.1} parent=1 // pred_check_branch
      %121 = sbr.rel (0) target = $region21
    $region20: #{tpu_custom_call.1} parent=1 // pred_region
      %s123 = ssub.s32 128, 128
      %124 = vsyncadd [#allocation4], %s123
      %s126 = sshll.u32 [#allocation7], 4
      %s127 = int_to_ptr.vmem [resolvable:$true] %s126
      %129 = dma.vmem_to_hbm [thread:$0]  %s127, 128, %s2, [#allocation4]
    $region21: #{tpu_custom_call.1} parent=1 // pred_fallthru
      _
    // Predicated region
    $region22: #{tpu_custom_call.1} parent=1 // pred_check
      _
    $region23: #{tpu_custom_call.1} parent=1 // pred_check_branch
      %131 = sbr.rel (0) target = $region25
    $region24: #{tpu_custom_call.1} parent=1 // pred_region
      %132 = dma.done [#allocation4], 128
    $region25: #{tpu_custom_call.1} parent=1 // pred_fallthru
      _
    %133 = vsyncpa [#allocation3], 1
    %134 = vsyncpa [#allocation6], 1
    %135 = vsyncpa [#allocation4], 1

</llo_original>
